<compile_context>
chip_gen: v7x
topology: tpu7x:2x2x1
jax: 0.10.0
libtpu: 0.0.40
codegen_flags: <defaults>
</compile_context>

<pallas_src>
import math

import jax
import jax.numpy as jnp
from jax.experimental import pallas as pl
from jax.experimental.pallas import tpu as pltpu


def _round_up(x, m):
    return (x + m - 1) // m * m


def _padded_bytes(r, c, itemsize):
    # (8, 128)-tile padded VMEM footprint of a 2-D block (for budgeting only).
    return _round_up(max(int(r), 1), 8) * _round_up(max(int(c), 1), 128) * itemsize


def _vmem_capacity_bytes():
    try:
        cap = getattr(pltpu.get_tpu_info(), "vmem_capacity_bytes", None)
        if cap:
            return int(cap)
    except Exception:
        pass
    return 64 << 20  # conservative fallback (v7x per-core VMEM)


def _choose_tb(B):
    # Prefer: multiple of 8 that divides B (no batch padding -> no output-slice copy)
    # and gives >= 2 blocks on the "parallel" grid axis (keeps both v7x cores busy).
    if B <= 8:
        return B                                    # single full-dim block, no padding
    best = None
    for tb in range(8, min(B // 2, 256) + 1, 8):
        if B % tb == 0:
            best = tb
    if best is not None:
        return best
    if B <= 256:
        return B                                    # single full-dim block, no padding
    return min(256, _round_up((B + 1) // 2, 8))     # small pad, keep >= 2 blocks


def _make_kernel(TB, TL, D, n_side_pad, rep0):
    total = TL * D

    def kernel(ids_ref, tab_ref, w1_ref, b1_ref, g_ref, be_ref, w2_ref, b2_ref,
               out_ref, y_ref):
        # Heavy path: gather + MLP + LayerNorm only on the first seq step of each B tile.
        @pl.when(pl.program_id(1) == 0)
        def _():
            ids = ids_ref[...]                                           # (TB, 1) int32
            iota = jax.lax.broadcasted_iota(jnp.int32, (TB, n_side_pad), 1)
            onehot = (iota == ids).astype(tab_ref.dtype)                 # (TB, n_side_pad)
            # Exact embedding gather on the otherwise-idle MXU.
            x = jnp.dot(onehot, tab_ref[...], preferred_element_type=jnp.float32)

            # Linear(s_embedding -> d_side)
            h = jnp.dot(x, w1_ref[...], preferred_element_type=jnp.float32) + b1_ref[...]

            # LayerNorm(d_side): biased variance, eps=1e-5 (PyTorch default)
            mean = jnp.mean(h, axis=-1, keepdims=True)
            var = jnp.mean((h - mean) * (h - mean), axis=-1, keepdims=True)
            hn = (h - mean) * jax.lax.rsqrt(var + 1e-5)
            hn = hn * g_ref[...] + be_ref[...]

            # ReLU
            hn = jnp.maximum(hn, 0.0)

            # Linear(d_side -> d_side); keep only the tiny (TB, D) result resident.
            y_ref[...] = (jnp.dot(hn, w2_ref[...], preferred_element_type=jnp.float32)
                          + b2_ref[...])

        # Every seq step: broadcast y across the lane-dense output block.
        y = y_ref[...].astype(out_ref.dtype)                             # (TB, D)
        if rep0 > 1:
            out_ref[:, 0:rep0 * D] = jnp.tile(y, (1, rep0))
        else:
            out_ref[:, 0:D] = y
        filled = rep0 * D
        while filled < total:                     # static log2(TL) doubling copies
            c = min(filled, total - filled)
            out_ref[:, filled:filled + c] = out_ref[:, 0:c]
            filled += c

    return kernel


def side_embedder_forward(side, a_seq_length, params, out_dtype=jnp.float32):
    """Pallas forward of SideEmbedder. out_dtype=jnp.bfloat16 would halve the HBM-write
    traffic (the real roofline) if the consumer tolerates it; default keeps f32 semantics."""
    emb_table, w1, b1, gamma, beta, w2, b2 = params

    side_flat = side.reshape(-1).astype(jnp.int32)         # side.view(-1, 1)
    B = int(side_flat.shape[0])
    n_side, S = emb_table.shape
    D = int(w2.shape[1])
    L = int(a_seq_length)
    out_elem = jnp.dtype(out_dtype).itemsize

    # ---- batch tiling ---------------------------------------------------------------
    TB = _choose_tb(B)
    B_pad = _round_up(B, TB)
    rows = _round_up(max(TB, 1), 8)                         # sublane-padded rows

    # ---- VMEM budget (per-chip, via get_tpu_info) -------------------------------------
    n_side_pad = _round_up(n_side, 8)
    vmem_cap = _vmem_capacity_bytes()
    tab_item = emb_table.dtype.itemsize
    # Resident inputs are double-buffered by the pipeline; the y scratch is single.
    param_resident = 2 * (_padded_bytes(n_side_pad, S, tab_item)
                          + _padded_bytes(S, D, 4)
                          + _padded_bytes(D, D, 4)
                          + 4 * _padded_bytes(1, D, 4)
                          + _padded_bytes(TB, 1, 4))
    param_resident += _padded_bytes(TB, D, 4)
    # TODO(synk): for very large n_side the resident table will not fit VMEM; fall back to
    # an HBM (pl.ANY) table + manual DMA gather in that case.

    budget = vmem_cap // 2                                  # headroom for compiler scratch
    block_cap = (8 << 20) if vmem_cap <= (64 << 20) else (16 << 20)
    out_block_budget = max(128 * 1024,
                           min((budget - param_resident) // 2, block_cap))

    # ---- seq tiling (lane-dense, VMEM-budgeted, prefer TL | L) ------------------------
    lane_mult = 128 // math.gcd(D, 128)                     # smallest TL with TL*D % 128 == 0
    tl_cap = max(1, out_block_budget // (rows * D * out_elem))
    if L <= tl_cap:
        TL = L                                              # single seq block, no padding
    else:
        tl_aligned = max(lane_mult, (tl_cap // lane_mult) * lane_mult)
        divisors = [t for t in range(lane_mult, min(tl_aligned, L) + 1, lane_mult)
                    if L % t == 0]
        TL = divisors[-1] if divisors else min(tl_aligned, L)
    L_pad = _round_up(L, TL)

    # First broadcast chunk written via jnp.tile: lane-aligned when possible, kept modest;
    # doubling copies fill the rest of the block.
    rep0 = max(1, min(TL, lane_mult, max(1, 1024 // D)))

    # ---- wrapper-side padding (sliced off only if actually present) -------------------
    ids2d = jnp.pad(side_flat, (0, B_pad - B)).reshape(B_pad, 1)
    tab = jnp.pad(emb_table, ((0, n_side_pad - n_side), (0, 0)))   # native dtype

    grid = (B_pad // TB, L_pad // TL)
    inv = lambda b, l: (0, 0)                               # grid-invariant blocks

    out_block_bytes = rows * _round_up(TL * D, 128) * out_elem
    need = 2 * out_block_bytes + param_resident + (4 << 20)
    vmem_limit = int(min(vmem_cap, max(need, 32 << 20)))

    out_flat = pl.pallas_call(
        _make_kernel(TB, TL, D, n_side_pad, rep0),
        out_shape=jax.ShapeDtypeStruct((B_pad, L_pad * D), out_dtype),
        grid_spec=pltpu.PrefetchScalarGridSpec(
            num_scalar_prefetch=0,
            grid=grid,
            in_specs=[
                pl.BlockSpec((TB, 1), lambda b, l: (b, 0)),          # ids (int32)
                pl.BlockSpec((n_side_pad, S), inv),                  # embedding table
                pl.BlockSpec((S, D), inv),                           # w1
                pl.BlockSpec((1, D), inv),                           # b1
                pl.BlockSpec((1, D), inv),                           # gamma
                pl.BlockSpec((1, D), inv),                           # beta
                pl.BlockSpec((D, D), inv),                           # w2
                pl.BlockSpec((1, D), inv),                           # b2
            ],
            out_specs=pl.BlockSpec((TB, TL * D), lambda b, l: (b, l)),
            scratch_shapes=[pltpu.VMEM((TB, D), jnp.float32)],       # y (per-B-tile MLP out)
        ),
        compiler_params=pltpu.CompilerParams(
            dimension_semantics=("parallel", "arbitrary"),
            vmem_limit_bytes=vmem_limit),
    )(ids2d, tab, w1, b1, gamma, beta, w2, b2)

    out = out_flat.reshape(B_pad, L_pad, D)                 # free reshape
    if B_pad != B or L_pad != L:
        out = out[:B, :L, :]                                # only copies when padding exists
    return out


def make_params(key, n_side, s_embedding, d_side):
    k0, k1, k2 = jax.random.split(key, 3)
    emb_table = jax.random.normal(k0, (n_side, s_embedding), jnp.float32)
    # Linear weights stored pre-transposed: y = x @ W + b
    w1 = jax.random.normal(k1, (s_embedding, d_side), jnp.float32) * 0.1
    b1 = jnp.zeros((1, d_side), jnp.float32)
    gamma = jnp.ones((1, d_side), jnp.float32)
    beta = jnp.zeros((1, d_side), jnp.float32)
    w2 = jax.random.normal(k2, (d_side, d_side), jnp.float32) * 0.1
    b2 = jnp.zeros((1, d_side), jnp.float32)
    return emb_table, w1, b1, gamma, beta, w2, b2


def _reference(side, a_seq_length, params):
    emb_table, w1, b1, gamma, beta, w2, b2 = params
    x = emb_table[side.reshape(-1)]
    h = x @ w1 + b1
    mean = h.mean(-1, keepdims=True)
    var = ((h - mean) ** 2).mean(-1, keepdims=True)
    hn = (h - mean) / jnp.sqrt(var + 1e-5) * gamma + beta
    hn = jnp.maximum(hn, 0.0)
    y = hn @ w2 + b2
    return jnp.broadcast_to(y[:, None, :], (x.shape[0], a_seq_length, y.shape[-1]))


if __name__ == "__main__":
    key = jax.random.PRNGKey(0)
    n_side, s_embedding, d_side = 10, 32, 32
    B, a_seq_length = 2, 8

    kp, ks = jax.random.split(key)
    params = make_params(kp, n_side, s_embedding, d_side)
    side = jax.random.randint(ks, (B,), 0, n_side, dtype=jnp.int32)

    out = side_embedder_forward(side, a_seq_length, params)
    out = jax.block_until_ready(out)

    ref = _reference(side, a_seq_length, params)
    assert out.shape == (B, a_seq_length, d_side)
    err = float(jnp.max(jnp.abs(out - ref)))
    assert err < 1e-4, err

    print("KERNEL_OK")
</pallas_src>

<mosaic_0001>
module attributes {stable_mosaic.version = 11 : i64} {
  func.func @kernel(%arg0: i32, %arg1: i32, %arg2: memref<2x1xi32, #tpu.memory_space<vmem>>, %arg3: memref<16x32xf32, #tpu.memory_space<vmem>>, %arg4: memref<32x32xf32, #tpu.memory_space<vmem>>, %arg5: memref<1x32xf32, #tpu.memory_space<vmem>>, %arg6: memref<1x32xf32, #tpu.memory_space<vmem>>, %arg7: memref<1x32xf32, #tpu.memory_space<vmem>>, %arg8: memref<32x32xf32, #tpu.memory_space<vmem>>, %arg9: memref<1x32xf32, #tpu.memory_space<vmem>>, %arg10: memref<2x256xf32, #tpu.memory_space<vmem>>, %arg11: memref<2x32xf32, #tpu.memory_space<vmem>>) attributes {dimension_semantics = [#tpu.dimension_semantics<parallel>, #tpu.dimension_semantics<arbitrary>], iteration_bounds = array<i64: 1, 1>, scalar_prefetch = 0 : i64, scratch_operands = 1 : i64, tpu.core_type = #tpu.core_type<tc>, window_params = [{transform_indices = @transform_0, window_bounds = array<i64: 2, 1>}, {pipeline_mode = #tpu.pipeline_mode<synchronous>, transform_indices = @transform_1, window_bounds = array<i64: 16, 32>}, {pipeline_mode = #tpu.pipeline_mode<synchronous>, transform_indices = @transform_2, window_bounds = array<i64: 32, 32>}, {pipeline_mode = #tpu.pipeline_mode<synchronous>, transform_indices = @transform_3, window_bounds = array<i64: 1, 32>}, {pipeline_mode = #tpu.pipeline_mode<synchronous>, transform_indices = @transform_4, window_bounds = array<i64: 1, 32>}, {pipeline_mode = #tpu.pipeline_mode<synchronous>, transform_indices = @transform_5, window_bounds = array<i64: 1, 32>}, {pipeline_mode = #tpu.pipeline_mode<synchronous>, transform_indices = @transform_6, window_bounds = array<i64: 32, 32>}, {pipeline_mode = #tpu.pipeline_mode<synchronous>, transform_indices = @transform_7, window_bounds = array<i64: 1, 32>}, {transform_indices = @transform_8, window_bounds = array<i64: 2, 256>}]} {
    %c0_i32 = arith.constant 0 : i32
    %0 = arith.cmpi eq, %arg1, %c0_i32 : i32
    %1 = arith.extui %0 : i1 to i32
    %c0_i32_0 = arith.constant 0 : i32
    %2 = arith.cmpi ne, %1, %c0_i32_0 : i32
    scf.if %2 {
      %c0_7 = arith.constant 0 : index
      %c0_8 = arith.constant 0 : index
      %8 = vector.load %arg2[%c0_7, %c0_8] : memref<2x1xi32, #tpu.memory_space<vmem>>, vector<2x1xi32>
      %9 = tpu.iota {dimensions = array<i32: 1>} : vector<2x16xi32>
      %10 = vector.broadcast %8 : vector<2x1xi32> to vector<2x16xi32>
      %11 = arith.cmpi eq, %9, %10 : vector<2x16xi32>
      %12 = arith.extui %11 : vector<2x16xi1> to vector<2x16xi32>
      %13 = arith.sitofp %12 : vector<2x16xi32> to vector<2x16xf32>
      %c0_9 = arith.constant 0 : index
      %c0_10 = arith.constant 0 : index
      %14 = vector.load %arg3[%c0_9, %c0_10] : memref<16x32xf32, #tpu.memory_space<vmem>>, vector<16x32xf32>
      %cst = arith.constant dense<0.000000e+00> : vector<2x32xf32>
      %15 = tpu.matmul %13, %14, %cst {dimension_numbers = #tpu.dot_dimension_numbers<[1], [0], [0], [1], [0, 0, 1, 1], [], []>} : vector<2x16xf32>, vector<16x32xf32>, vector<2x32xf32> -> vector<2x32xf32>
      %c0_11 = arith.constant 0 : index
      %c0_12 = arith.constant 0 : index
      %16 = vector.load %arg4[%c0_11, %c0_12] : memref<32x32xf32, #tpu.memory_space<vmem>>, vector<32x32xf32>
      %cst_13 = arith.constant dense<0.000000e+00> : vector<2x32xf32>
      %17 = tpu.matmul %15, %16, %cst_13 {dimension_numbers = #tpu.dot_dimension_numbers<[1], [0], [0], [1], [0, 0, 1, 1], [], []>} : vector<2x32xf32>, vector<32x32xf32>, vector<2x32xf32> -> vector<2x32xf32>
      %c0_14 = arith.constant 0 : index
      %c0_15 = arith.constant 0 : index
      %18 = vector.load %arg5[%c0_14, %c0_15] : memref<1x32xf32, #tpu.memory_space<vmem>>, vector<1x32xf32>
      %19 = vector.broadcast %18 : vector<1x32xf32> to vector<2x32xf32>
      %20 = arith.addf %17, %19 : vector<2x32xf32>
      %cst_16 = arith.constant dense<0.000000e+00> : vector<2xf32>
      %21 = vector.multi_reduction <add>, %20, %cst_16 [1] : vector<2x32xf32> to vector<2xf32>
      %22 = vector.shape_cast %21 : vector<2xf32> to vector<2x1xf32>
      %cst_17 = arith.constant 3.200000e+01 : f32
      %23 = vector.broadcast %cst_17 : f32 to vector<2x1xf32>
      %24 = arith.divf %22, %23 : vector<2x1xf32>
      %25 = vector.broadcast %24 : vector<2x1xf32> to vector<2x32xf32>
      %26 = arith.subf %20, %25 : vector<2x32xf32>
      %27 = vector.broadcast %24 : vector<2x1xf32> to vector<2x32xf32>
      %28 = arith.subf %20, %27 : vector<2x32xf32>
      %29 = arith.mulf %26, %28 : vector<2x32xf32>
      %cst_18 = arith.constant dense<0.000000e+00> : vector<2xf32>
      %30 = vector.multi_reduction <add>, %29, %cst_18 [1] : vector<2x32xf32> to vector<2xf32>
      %31 = vector.shape_cast %30 : vector<2xf32> to vector<2x1xf32>
      %cst_19 = arith.constant 3.200000e+01 : f32
      %32 = vector.broadcast %cst_19 : f32 to vector<2x1xf32>
      %33 = arith.divf %31, %32 : vector<2x1xf32>
      %34 = vector.broadcast %24 : vector<2x1xf32> to vector<2x32xf32>
      %35 = arith.subf %20, %34 : vector<2x32xf32>
      %cst_20 = arith.constant 9.99999974E-6 : f32
      %36 = vector.broadcast %cst_20 : f32 to vector<2x1xf32>
      %37 = arith.addf %33, %36 : vector<2x1xf32>
      %38 = math.rsqrt %37 : vector<2x1xf32>
      %39 = vector.broadcast %38 : vector<2x1xf32> to vector<2x32xf32>
      %40 = arith.mulf %35, %39 : vector<2x32xf32>
      %c0_21 = arith.constant 0 : index
      %c0_22 = arith.constant 0 : index
      %41 = vector.load %arg6[%c0_21, %c0_22] : memref<1x32xf32, #tpu.memory_space<vmem>>, vector<1x32xf32>
      %42 = vector.broadcast %41 : vector<1x32xf32> to vector<2x32xf32>
      %43 = arith.mulf %40, %42 : vector<2x32xf32>
      %c0_23 = arith.constant 0 : index
      %c0_24 = arith.constant 0 : index
      %44 = vector.load %arg7[%c0_23, %c0_24] : memref<1x32xf32, #tpu.memory_space<vmem>>, vector<1x32xf32>
      %45 = vector.broadcast %44 : vector<1x32xf32> to vector<2x32xf32>
      %46 = arith.addf %43, %45 : vector<2x32xf32>
      %cst_25 = arith.constant 0.000000e+00 : f32
      %47 = vector.broadcast %cst_25 : f32 to vector<2x32xf32>
      %48 = arith.maximumf %46, %47 : vector<2x32xf32>
      %c0_26 = arith.constant 0 : index
      %c0_27 = arith.constant 0 : index
      %49 = vector.load %arg8[%c0_26, %c0_27] : memref<32x32xf32, #tpu.memory_space<vmem>>, vector<32x32xf32>
      %cst_28 = arith.constant dense<0.000000e+00> : vector<2x32xf32>
      %50 = tpu.matmul %48, %49, %cst_28 {dimension_numbers = #tpu.dot_dimension_numbers<[1], [0], [0], [1], [0, 0, 1, 1], [], []>} : vector<2x32xf32>, vector<32x32xf32>, vector<2x32xf32> -> vector<2x32xf32>
      %c0_29 = arith.constant 0 : index
      %c0_30 = arith.constant 0 : index
      %51 = vector.load %arg9[%c0_29, %c0_30] : memref<1x32xf32, #tpu.memory_space<vmem>>, vector<1x32xf32>
      %52 = vector.broadcast %51 : vector<1x32xf32> to vector<2x32xf32>
      %53 = arith.addf %50, %52 : vector<2x32xf32>
      %c0_31 = arith.constant 0 : index
      %c0_32 = arith.constant 0 : index
      %54 = vector.load %arg11[%c0_31, %c0_32] : memref<2x32xf32, #tpu.memory_space<vmem>>, vector<2x32xf32>
      tpu.vector_store %arg11[%c0_31, %c0_32], %53 {strides = array<i32>} : memref<2x32xf32, #tpu.memory_space<vmem>>, vector<2x32xf32>,
    } else {
    }
    %c0 = arith.constant 0 : index
    %c0_1 = arith.constant 0 : index
    %3 = vector.load %arg11[%c0, %c0_1] : memref<2x32xf32, #tpu.memory_space<vmem>>, vector<2x32xf32>
    %4 = tpu.concatenate %3, %3, %3, %3 in 1 : vector<2x32xf32>, vector<2x32xf32>, vector<2x32xf32>, vector<2x32xf32> -> vector<2x128xf32>
    %c0_2 = arith.constant 0 : index
    %c0_3 = arith.constant 0 : index
    %5 = vector.load %arg10[%c0_2, %c0_3] : memref<2x256xf32, #tpu.memory_space<vmem>>, vector<2x128xf32>
    tpu.vector_store %arg10[%c0_2, %c0_3], %4 {strides = array<i32>} : memref<2x256xf32, #tpu.memory_space<vmem>>, vector<2x128xf32>,
    %c0_4 = arith.constant 0 : index
    %c0_5 = arith.constant 0 : index
    %6 = vector.load %arg10[%c0_4, %c0_5] : memref<2x256xf32, #tpu.memory_space<vmem>>, vector<2x128xf32>
    %c0_6 = arith.constant 0 : index
    %c128 = arith.constant 128 : index
    %7 = vector.load %arg10[%c0_6, %c128] : memref<2x256xf32, #tpu.memory_space<vmem>>, vector<2x128xf32>
    tpu.vector_store %arg10[%c0_6, %c128], %6 {strides = array<i32>} : memref<2x256xf32, #tpu.memory_space<vmem>>, vector<2x128xf32>,
    return
  }
  func.func @transform_0(%arg0: i32, %arg1: i32) -> (i32, i32) {
    %c0_i32 = arith.constant 0 : i32
    %c0_i32_0 = arith.constant 0 : i32
    return %arg0, %c0_i32 : i32, i32
  }
  func.func @transform_1(%arg0: i32, %arg1: i32) -> (i32, i32) {
    %c0_i32 = arith.constant 0 : i32
    %c0_i32_0 = arith.constant 0 : i32
    %c0_i32_1 = arith.constant 0 : i32
    return %c0_i32, %c0_i32_0 : i32, i32
  }
  func.func @transform_2(%arg0: i32, %arg1: i32) -> (i32, i32) {
    %c0_i32 = arith.constant 0 : i32
    %c0_i32_0 = arith.constant 0 : i32
    %c0_i32_1 = arith.constant 0 : i32
    return %c0_i32, %c0_i32_0 : i32, i32
  }
  func.func @transform_3(%arg0: i32, %arg1: i32) -> (i32, i32) {
    %c0_i32 = arith.constant 0 : i32
    %c0_i32_0 = arith.constant 0 : i32
    %c0_i32_1 = arith.constant 0 : i32
    return %c0_i32, %c0_i32_0 : i32, i32
  }
  func.func @transform_4(%arg0: i32, %arg1: i32) -> (i32, i32) {
    %c0_i32 = arith.constant 0 : i32
    %c0_i32_0 = arith.constant 0 : i32
    %c0_i32_1 = arith.constant 0 : i32
    return %c0_i32, %c0_i32_0 : i32, i32
  }
  func.func @transform_5(%arg0: i32, %arg1: i32) -> (i32, i32) {
    %c0_i32 = arith.constant 0 : i32
    %c0_i32_0 = arith.constant 0 : i32
    %c0_i32_1 = arith.constant 0 : i32
    return %c0_i32, %c0_i32_0 : i32, i32
  }
  func.func @transform_6(%arg0: i32, %arg1: i32) -> (i32, i32) {
    %c0_i32 = arith.constant 0 : i32
    %c0_i32_0 = arith.constant 0 : i32
    %c0_i32_1 = arith.constant 0 : i32
    return %c0_i32, %c0_i32_0 : i32, i32
  }
  func.func @transform_7(%arg0: i32, %arg1: i32) -> (i32, i32) {
    %c0_i32 = arith.constant 0 : i32
    %c0_i32_0 = arith.constant 0 : i32
    %c0_i32_1 = arith.constant 0 : i32
    return %c0_i32, %c0_i32_0 : i32, i32
  }
  func.func @transform_8(%arg0: i32, %arg1: i32) -> (i32, i32) {
    %c0_i32 = arith.constant 0 : i32
    return %arg0, %arg1 : i32, i32
  }
}

</mosaic_0001>

<llo_original>
// kernel: tpu_custom_call.1
$region0: #{tpu_custom_call.1}
  #allocation0 [shape = 'u32[]', space=smem, size = 0x4, offset = 0x4, fixed_abs, tag = 'smem constant byte address 0x4 - core index']
  #allocation1 [shape = 'u32[144,128]{1,0:T(1,128)}', space=vmem, size = 0x12000, scoped, tag = 'internal scratch']
  #allocation2 [shape = 'f32[2,32]{1,0:T(2,128)}', space=vmem, size = 0x400, scoped, tag = 'scratch operand']
  %s0 = inlined_call_operand.vmem [shape: s32[2,1], index: 0, kind: input, shape index: {}]
  %s1 = inlined_call_operand.hbm [shape: f32[16,32], index: 1, kind: input, shape index: {}]
  %s2 = inlined_call_operand.hbm [shape: f32[32,32], index: 2, kind: input, shape index: {}]
  %s3 = inlined_call_operand.vmem [shape: f32[1,32], index: 3, kind: input, shape index: {}]
  %s4 = inlined_call_operand.vmem [shape: f32[1,32], index: 4, kind: input, shape index: {}]
  %s5 = inlined_call_operand.vmem [shape: f32[1,32], index: 5, kind: input, shape index: {}]
  %s6 = inlined_call_operand.hbm [shape: f32[32,32], index: 6, kind: input, shape index: {}]
  %s7 = inlined_call_operand.vmem [shape: f32[1,32], index: 7, kind: input, shape index: {}]
  %s8 = inlined_call_operand.hbm [shape: f32[2,256], index: 8, kind: output, shape index: {}]
  %s9 = sld [smem:[#allocation0]]
  $region58: #{tpu_custom_call.1} parent=0
    _
  %s11 = ssub.s32 1, %s9
  %s12 = scalar_select 0, %s11, %s9
  $region1: #{tpu_custom_call.1} parent=0
    #allocation3 [shape = 'u8[8192]{0}', space=vmem, size = 0x2000, scoped, tag = 'input window, operand 1, single buffered']
    #allocation4 [shape = 's32[1]{0}', space=sflag, size = 0x4, scoped, tag = 'scoped memory for tpu_custom_call.1']
    #allocation5 [shape = 's32[1]{0}', space=sflag, size = 0x4, scoped, tag = 'scoped memory for tpu_custom_call.1']
    #allocation6 [shape = 'u8[16384]{0}', space=vmem, size = 0x4000, scoped, tag = 'input window, operand 2, single buffered']
    #allocation7 [shape = 's32[1]{0}', space=sflag, size = 0x4, scoped, tag = 'scoped memory for tpu_custom_call.1']
    #allocation8 [shape = 'u8[16384]{0}', space=vmem, size = 0x4000, scoped, tag = 'input window, operand 6, single buffered']
    #allocation9 [shape = 'u8[2048]{0}', space=vmem, size = 0x800, scoped, tag = 'output window, operand 0, single buffered']
    %13 = vsyncpa [#allocation4], 0
    %14 = vsyncpa [#allocation7], 0
    %15 = vsyncpa [#allocation5], 0
    // Predicated region
    $region2: #{tpu_custom_call.1} parent=1 // pred_check
      _
    $region3: #{tpu_custom_call.1} parent=1 // pred_check_branch
      %17 = sbr.rel (0) target = $region5
    $region4: #{tpu_custom_call.1} parent=1 // pred_region
      _
    $region5: #{tpu_custom_call.1} parent=1 // pred_fallthru
      _
    // Predicated region
    $region6: #{tpu_custom_call.1} parent=1 // pred_check
      _
    $region7: #{tpu_custom_call.1} parent=1 // pred_check_branch
      %19 = sbr.rel (0) target = $region9
    $region8: #{tpu_custom_call.1} parent=1 // pred_region
      %s21 = ssub.s32 256, 256
      %22 = vsyncadd [#allocation4], %s21
      %s23 = sshll.u32 [#allocation3], 4
      %s24 = int_to_ptr.vmem [resolvable:$true] %s23
      %29 = dma.hbm_to_vmem [thread:$0]  %s1, 256, %s24, [#allocation4], 128, 128, 8
    $region9: #{tpu_custom_call.1} parent=1 // pred_fallthru
      _
    // Predicated region
    $region10: #{tpu_custom_call.1} parent=1 // pred_check
      _
    $region11: #{tpu_custom_call.1} parent=1 // pred_check_branch
      %31 = sbr.rel (0) target = $region13
    $region12: #{tpu_custom_call.1} parent=1 // pred_region
      %s33 = ssub.s32 512, 512
      %34 = vsyncadd [#allocation7], %s33
      %s35 = sshll.u32 [#allocation6], 4
      %s36 = int_to_ptr.vmem [resolvable:$true] %s35
      %41 = dma.hbm_to_vmem [thread:$0]  %s2, 512, %s36, [#allocation7], 128, 128, 8
    $region13: #{tpu_custom_call.1} parent=1 // pred_fallthru
      _
    // Predicated region
    $region14: #{tpu_custom_call.1} parent=1 // pred_check
      _
    $region15: #{tpu_custom_call.1} parent=1 // pred_check_branch
      %43 = sbr.rel (0) target = $region17
    $region16: #{tpu_custom_call.1} parent=1 // pred_region
      _
    $region17: #{tpu_custom_call.1} parent=1 // pred_fallthru
      _
    // Predicated region
    $region18: #{tpu_custom_call.1} parent=1 // pred_check
      _
    $region19: #{tpu_custom_call.1} parent=1 // pred_check_branch
      %45 = sbr.rel (0) target = $region21
    $region20: #{tpu_custom_call.1} parent=1 // pred_region
      _
    $region21: #{tpu_custom_call.1} parent=1 // pred_fallthru
      _
    // Predicated region
    $region22: #{tpu_custom_call.1} parent=1 // pred_check
      _
    $region23: #{tpu_custom_call.1} parent=1 // pred_check_branch
      %47 = sbr.rel (0) target = $region25
    $region24: #{tpu_custom_call.1} parent=1 // pred_region
      _
    $region25: #{tpu_custom_call.1} parent=1 // pred_fallthru
      _
    // Predicated region
    $region26: #{tpu_custom_call.1} parent=1 // pred_check
      _
    $region27: #{tpu_custom_call.1} parent=1 // pred_check_branch
      %49 = sbr.rel (0) target = $region29
    $region28: #{tpu_custom_call.1} parent=1 // pred_region
      %s51 = ssub.s32 512, 512
      %52 = vsyncadd [#allocation7], %s51
      %s53 = sshll.u32 [#allocation8], 4
      %s54 = int_to_ptr.vmem [resolvable:$true] %s53
      %59 = dma.hbm_to_vmem [thread:$0]  %s6, 512, %s54, [#allocation7], 128, 128, 8
    $region29: #{tpu_custom_call.1} parent=1 // pred_fallthru
      _
    // Predicated region
    $region30: #{tpu_custom_call.1} parent=1 // pred_check
      _
    $region31: #{tpu_custom_call.1} parent=1 // pred_check_branch
      %61 = sbr.rel (0) target = $region33
    $region32: #{tpu_custom_call.1} parent=1 // pred_region
      _
    $region33: #{tpu_custom_call.1} parent=1 // pred_fallthru
      _
    // Predicated region
    $region34: #{tpu_custom_call.1} parent=1 // pred_check
      _
    $region35: #{tpu_custom_call.1} parent=1 // pred_check_branch
      %63 = sbr.rel (0) target = $region37
    $region36: #{tpu_custom_call.1} parent=1 // pred_region
      %64 = dma.done [#allocation4], 256
    $region37: #{tpu_custom_call.1} parent=1 // pred_fallthru
      _
    // Predicated region
    $region38: #{tpu_custom_call.1} parent=1 // pred_check
      _
    $region39: #{tpu_custom_call.1} parent=1 // pred_check_branch
      %66 = sbr.rel (0) target = $region41
    $region40: #{tpu_custom_call.1} parent=1 // pred_region
      %67 = dma.done [#allocation7], 512
    $region41: #{tpu_custom_call.1} parent=1 // pred_fallthru
      _
    // Predicated region
    $region42: #{tpu_custom_call.1} parent=1 // pred_check
      _
    $region43: #{tpu_custom_call.1} parent=1 // pred_check_branch
      %69 = sbr.rel (0) target = $region45
    $region44: #{tpu_custom_call.1} parent=1 // pred_region
      %70 = dma.done [#allocation7], 512
    $region45: #{tpu_custom_call.1} parent=1 // pred_fallthru
      _
    %p71 = scmp.eq.s32.totalorder 0, 0
    // Predicated region
    $region46: #{tpu_custom_call.1} parent=1 // pred_check
      %p72 = pneg %p71
    $region47: #{tpu_custom_call.1} parent=1 // pred_check_branch
      %74 = sbr.rel (%p72) target = $region49
    $region48: #{tpu_custom_call.1} parent=1 // pred_region
      %v75 = vld [vmem:[%s0] sm:$0x3]
      %v76 = vlaneseq
      %v77 = vand.u32 %v76, 127
      %78 = vset.pattern.permute.xlu0 0
      %79 = vperm.xlu0 %78, %v75
      %v80 = vpop.permute.xlu0 %79
      %vm81 = vcmp.eq.s32.totalorder %v77, %v80
      %v82 = vsel %vm81, 1, 0
      %v83 = vcvt.s32.f32 %v82
      %v84 = vld [vmem:[#allocation3] sm:$0xff]
      %v85 = vld [vmem:[#allocation3 + $0x8] sm:$0xff]
      %vm86 = vcmask 130048
      %v88 = vsel %vm86, %v83, 0
      %90 = vmatprep.subr.mxu0 0.0
      %91 = vmatpush1.msra.mxu0 %v84
      %92 = vmatprep.subr.mxu0 0.0
      %93 = vmatpush1.msra.mxu0 %v85
      %94 = vmatprep.subr.mxu0 0.0
      %95 = vmatpush1.msra.mxu0 0.0
      %96 = vmatprep.subr.mxu0 0.0
      %97 = vmatpush1.msra.mxu0 0.0
      %98 = vmatprep.subr.mxu0 0.0
      %99 = vmatpush1.msra.mxu0 0.0
      %100 = vmatprep.subr.mxu0 0.0
      %101 = vmatpush1.msra.mxu0 0.0
      %102 = vmatprep.subr.mxu0 0.0
      %103 = vmatpush1.msra.mxu0 0.0
      %104 = vmatprep.subr.mxu0 0.0
      %105 = vmatpush1.msra.mxu0 0.0
      %106 = vmatprep.subr.mxu0 0.0
      %107 = vmatpush1.msra.mxu0 0.0
      %108 = vmatprep.subr.mxu0 0.0
      %109 = vmatpush1.msra.mxu0 0.0
      %110 = vmatprep.subr.mxu0 0.0
      %111 = vmatpush1.msra.mxu0 0.0
      %112 = vmatprep.subr.mxu0 0.0
      %113 = vmatpush1.msra.mxu0 0.0
      %114 = vmatprep.subr.mxu0 0.0
      %115 = vmatpush1.msra.mxu0 0.0
      %116 = vmatprep.subr.mxu0 0.0
      %117 = vmatpush1.msra.mxu0 0.0
      %118 = vmatprep.subr.mxu0 0.0
      %119 = vmatpush1.msra.mxu0 0.0
      %120 = vmatprep.subr.mxu0 0.0
      %121 = vmatpush1.msra.mxu0 0.0
      %122 = vmatprep.subr.mxu0 0.0
      %123 = vmatpush1.msra.mxu0 0.0
      %124 = vmatprep.subr.mxu0 0.0
      %125 = vmatpush1.msra.mxu0 0.0
      %126 = vmatprep.subr.mxu0 0.0
      %127 = vmatpush1.msra.mxu0 0.0
      %128 = vmatprep.subr.mxu0 0.0
      %129 = vmatpush1.msra.mxu0 0.0
      %130 = vmatprep.subr.mxu0 0.0
      %131 = vmatpush1.msra.mxu0 0.0
      %132 = vmatprep.subr.mxu0 0.0
      %133 = vmatpush1.msra.mxu0 0.0
      %134 = vmatprep.subr.mxu0 0.0
      %135 = vmatpush1.msra.mxu0 0.0
      %136 = vmatprep.subr.mxu0 0.0
      %137 = vmatpush1.msra.mxu0 0.0
      %138 = vmatprep.subr.mxu0 0.0
      %139 = vmatpush1.msra.mxu0 0.0
      %140 = vmatprep.subr.mxu0 0.0
      %141 = vmatpush1.msra.mxu0 0.0
      %142 = vmatprep.subr.mxu0 0.0
      %143 = vmatpush1.msra.mxu0 0.0
      %144 = vmatprep.subr.mxu0 0.0
      %145 = vmatpush1.msra.mxu0 0.0
      %146 = vmatprep.subr.mxu0 0.0
      %147 = vmatpush1.msra.mxu0 0.0
      %148 = vmatprep.subr.mxu0 0.0
      %149 = vmatpush1.msra.mxu0 0.0
      %150 = vmatprep.subr.mxu0 0.0
      %151 = vmatpush1.msra.mxu0 0.0
      %152 = vmatprep.subr.mxu0 0.0
      %153 = vmatpush1.msra.mxu0 0.0
      %154 = vmatprep.mubr.f32.mxu0 0.0
      %155 = vmatmul.mubr.f32.gmra.mrb[0].mxu0 %v88
      %v156 = vpop.f32.mrb[0].mxu0
      %v157 = vadd.f32 0.0, %v156
      %v158 = vpop.f32.mrb[0].mxu0
      %159 = vdwg.mxu0
      %v160 = vld [vmem:[#allocation6] sm:$0xff]
      %v161 = vld [vmem:[#allocation6 + $0x8] sm:$0xff]
      %v162 = vld [vmem:[#allocation6 + $0x10] sm:$0xff]
      %v163 = vld [vmem:[#allocation6 + $0x18] sm:$0xff]
      %v164 = vld [vmem:[%s3] sm:$0x1]
      %v166 = vlaneseq
      %v167 = vshrl.u32 %v166, 7
      %v168 = vsub.s32 0, %v167
      %v169 = vrot.slane %v164, %v168
      %vm171 = vcmask 261120
      %v173 = vsel %vm171, %v157, 0
      %175 = vmatprep.subr.mxu0 0.0
      %176 = vmatpush1.msra.mxu0 %v160
      %177 = vmatprep.subr.mxu0 0.0
      %178 = vmatpush1.msra.mxu0 %v161
      %179 = vmatprep.subr.mxu0 0.0
      %180 = vmatpush1.msra.mxu0 %v162
      %181 = vmatprep.subr.mxu0 0.0
      %182 = vmatpush1.msra.mxu0 %v163
      %183 = vmatprep.subr.mxu0 0.0
      %184 = vmatpush1.msra.mxu0 0.0
      %185 = vmatprep.subr.mxu0 0.0
      %186 = vmatpush1.msra.mxu0 0.0
      %187 = vmatprep.subr.mxu0 0.0
      %188 = vmatpush1.msra.mxu0 0.0
      %189 = vmatprep.subr.mxu0 0.0
      %190 = vmatpush1.msra.mxu0 0.0
      %191 = vmatprep.subr.mxu0 0.0
      %192 = vmatpush1.msra.mxu0 0.0
      %193 = vmatprep.subr.mxu0 0.0
      %194 = vmatpush1.msra.mxu0 0.0
      %195 = vmatprep.subr.mxu0 0.0
      %196 = vmatpush1.msra.mxu0 0.0
      %197 = vmatprep.subr.mxu0 0.0
      %198 = vmatpush1.msra.mxu0 0.0
      %199 = vmatprep.subr.mxu0 0.0
      %200 = vmatpush1.msra.mxu0 0.0
      %201 = vmatprep.subr.mxu0 0.0
      %202 = vmatpush1.msra.mxu0 0.0
      %203 = vmatprep.subr.mxu0 0.0
      %204 = vmatpush1.msra.mxu0 0.0
      %205 = vmatprep.subr.mxu0 0.0
      %206 = vmatpush1.msra.mxu0 0.0
      %207 = vmatprep.subr.mxu0 0.0
      %208 = vmatpush1.msra.mxu0 0.0
      %209 = vmatprep.subr.mxu0 0.0
      %210 = vmatpush1.msra.mxu0 0.0
      %211 = vmatprep.subr.mxu0 0.0
      %212 = vmatpush1.msra.mxu0 0.0
      %213 = vmatprep.subr.mxu0 0.0
      %214 = vmatpush1.msra.mxu0 0.0
      %215 = vmatprep.subr.mxu0 0.0
      %216 = vmatpush1.msra.mxu0 0.0
      %217 = vmatprep.subr.mxu0 0.0
      %218 = vmatpush1.msra.mxu0 0.0
      %219 = vmatprep.subr.mxu0 0.0
      %220 = vmatpush1.msra.mxu0 0.0
      %221 = vmatprep.subr.mxu0 0.0
      %222 = vmatpush1.msra.mxu0 0.0
      %223 = vmatprep.subr.mxu0 0.0
      %224 = vmatpush1.msra.mxu0 0.0
      %225 = vmatprep.subr.mxu0 0.0
      %226 = vmatpush1.msra.mxu0 0.0
      %227 = vmatprep.subr.mxu0 0.0
      %228 = vmatpush1.msra.mxu0 0.0
      %229 = vmatprep.subr.mxu0 0.0
      %230 = vmatpush1.msra.mxu0 0.0
      %231 = vmatprep.subr.mxu0 0.0
      %232 = vmatpush1.msra.mxu0 0.0
      %233 = vmatprep.subr.mxu0 0.0
      %234 = vmatpush1.msra.mxu0 0.0
      %235 = vmatprep.subr.mxu0 0.0
      %236 = vmatpush1.msra.mxu0 0.0
      %237 = vmatprep.subr.mxu0 0.0
      %238 = vmatpush1.msra.mxu0 0.0
      %239 = vmatprep.mubr.f32.mxu0 0.0
      %240 = vmatmul.mubr.f32.gmra.mrb[0].mxu0 %v173
      %v241 = vpop.f32.mrb[0].mxu0
      %v242 = vadd.f32 %v169, %v241
      %v243 = vpop.f32.mrb[0].mxu0
      %244 = vdwg.mxu0
      %vm245 = vcmask 254976
      %v246 = vsel %vm245, %v242, 0.0
      %247 = vadd.xlane.f32.xlu0 %v246
      %v248 = vpop.xlane.xlu0 %247
      %v249 = vrcp.pop 32.0
      %v250 = vmul.f32 %v248, %v249
      %v251 = vsub.f32 %v242, %v250
      %v252 = vmul.f32 %v251, %v251
      %v253 = vsel %vm245, %v252, 0.0
      %254 = vadd.xlane.f32.xlu0 %v253
      %v255 = vpop.xlane.xlu0 %254
      %v256 = vmul.f32 %v255, %v249
      %v257 = vadd.f32 %v256, 1e-05
      %v258 = vrsqrt.pop %v257
      %v259 = vmul.f32 %v251, %v258
      %v260 = vld [vmem:[%s4] sm:$0x1]
      %v262 = vlaneseq
      %v263 = vshrl.u32 %v262, 7
      %v264 = vsub.s32 0, %v263
      %v265 = vrot.slane %v260, %v264
      %v267 = vmul.f32 %v259, %v265
      %v268 = vld [vmem:[%s5] sm:$0x1]
      %v270 = vlaneseq
      %v271 = vshrl.u32 %v270, 7
      %v272 = vsub.s32 0, %v271
      %v273 = vrot.slane %v268, %v272
      %v275 = vadd.f32 %v267, %v273
      %v276 = vmax.f32 %v275, 0.0
      %v277 = vld [vmem:[#allocation8] sm:$0xff]
      %v278 = vld [vmem:[#allocation8 + $0x8] sm:$0xff]
      %v279 = vld [vmem:[#allocation8 + $0x10] sm:$0xff]
      %v280 = vld [vmem:[#allocation8 + $0x18] sm:$0xff]
      %v281 = vld [vmem:[%s7] sm:$0x1]
      %v283 = vlaneseq
      %v284 = vshrl.u32 %v283, 7
      %v285 = vsub.s32 0, %v284
      %v286 = vrot.slane %v281, %v285
      %v289 = vsel %vm171, %v276, 0
      %291 = vmatprep.subr.mxu0 0.0
      %292 = vmatpush1.msra.mxu0 %v277
      %293 = vmatprep.subr.mxu0 0.0
      %294 = vmatpush1.msra.mxu0 %v278
      %295 = vmatprep.subr.mxu0 0.0
      %296 = vmatpush1.msra.mxu0 %v279
      %297 = vmatprep.subr.mxu0 0.0
      %298 = vmatpush1.msra.mxu0 %v280
      %299 = vmatprep.subr.mxu0 0.0
      %300 = vmatpush1.msra.mxu0 0.0
      %301 = vmatprep.subr.mxu0 0.0
      %302 = vmatpush1.msra.mxu0 0.0
      %303 = vmatprep.subr.mxu0 0.0
      %304 = vmatpush1.msra.mxu0 0.0
      %305 = vmatprep.subr.mxu0 0.0
      %306 = vmatpush1.msra.mxu0 0.0
      %307 = vmatprep.subr.mxu0 0.0
      %308 = vmatpush1.msra.mxu0 0.0
      %309 = vmatprep.subr.mxu0 0.0
      %310 = vmatpush1.msra.mxu0 0.0
      %311 = vmatprep.subr.mxu0 0.0
      %312 = vmatpush1.msra.mxu0 0.0
      %313 = vmatprep.subr.mxu0 0.0
      %314 = vmatpush1.msra.mxu0 0.0
      %315 = vmatprep.subr.mxu0 0.0
      %316 = vmatpush1.msra.mxu0 0.0
      %317 = vmatprep.subr.mxu0 0.0
      %318 = vmatpush1.msra.mxu0 0.0
      %319 = vmatprep.subr.mxu0 0.0
      %320 = vmatpush1.msra.mxu0 0.0
      %321 = vmatprep.subr.mxu0 0.0
      %322 = vmatpush1.msra.mxu0 0.0
      %323 = vmatprep.subr.mxu0 0.0
      %324 = vmatpush1.msra.mxu0 0.0
      %325 = vmatprep.subr.mxu0 0.0
      %326 = vmatpush1.msra.mxu0 0.0
      %327 = vmatprep.subr.mxu0 0.0
      %328 = vmatpush1.msra.mxu0 0.0
      %329 = vmatprep.subr.mxu0 0.0
      %330 = vmatpush1.msra.mxu0 0.0
      %331 = vmatprep.subr.mxu0 0.0
      %332 = vmatpush1.msra.mxu0 0.0
      %333 = vmatprep.subr.mxu0 0.0
      %334 = vmatpush1.msra.mxu0 0.0
      %335 = vmatprep.subr.mxu0 0.0
      %336 = vmatpush1.msra.mxu0 0.0
      %337 = vmatprep.subr.mxu0 0.0
      %338 = vmatpush1.msra.mxu0 0.0
      %339 = vmatprep.subr.mxu0 0.0
      %340 = vmatpush1.msra.mxu0 0.0
      %341 = vmatprep.subr.mxu0 0.0
      %342 = vmatpush1.msra.mxu0 0.0
      %343 = vmatprep.subr.mxu0 0.0
      %344 = vmatpush1.msra.mxu0 0.0
      %345 = vmatprep.subr.mxu0 0.0
      %346 = vmatpush1.msra.mxu0 0.0
      %347 = vmatprep.subr.mxu0 0.0
      %348 = vmatpush1.msra.mxu0 0.0
      %349 = vmatprep.subr.mxu0 0.0
      %350 = vmatpush1.msra.mxu0 0.0
      %351 = vmatprep.subr.mxu0 0.0
      %352 = vmatpush1.msra.mxu0 0.0
      %353 = vmatprep.subr.mxu0 0.0
      %354 = vmatpush1.msra.mxu0 0.0
      %355 = vmatprep.mubr.f32.mxu0 0.0
      %356 = vmatmul.mubr.f32.gmra.mrb[0].mxu0 %v289
      %v357 = vpop.f32.mrb[0].mxu0
      %v358 = vadd.f32 %v286, %v357
      %v359 = vpop.f32.mrb[0].mxu0
      %360 = vdwg.mxu0
      %361 = vst.msk [vmem:[#allocation2] sm:$0x3] %vm245, %v358
    $region49: #{tpu_custom_call.1} parent=1 // pred_fallthru
      _
    %v362 = vld [vmem:[#allocation2] sm:$0x3]
    %364 = vrot.lane.b32.xlu0 %v362, 32
    %v365 = vpop.permute.xlu0 %364
    %367 = vrot.lane.b32.xlu0 %v362, 64
    %v368 = vpop.permute.xlu0 %367
    %370 = vrot.lane.b32.xlu0 %v362, 96
    %v371 = vpop.permute.xlu0 %370
    %vm373 = vcmask 261120
    %v374 = vsel %vm373, %v362, %v365
    %vm375 = vcmask 523264
    %v376 = vsel %vm375, %v374, %v368
    %vm377 = vcmask 785408
    %v378 = vsel %vm377, %v376, %v371
    %379 = vst [vmem:[#allocation9] sm:$0x3] %v378
    %v380 = vld [vmem:[#allocation9] sm:$0x3]
    %381 = vst [vmem:[#allocation9 + $0x2] sm:$0x3] %v380
    // Predicated region
    $region50: #{tpu_custom_call.1} parent=1 // pred_check
      _
    $region51: #{tpu_custom_call.1} parent=1 // pred_check_branch
      %383 = sbr.rel (0) target = $region53
    $region52: #{tpu_custom_call.1} parent=1 // pred_region
      %s385 = ssub.s32 64, 64
      %386 = vsyncadd [#allocation5], %s385
      %s388 = sshll.u32 [#allocation9], 4
      %s389 = int_to_ptr.vmem [resolvable:$true] %s388
      %391 = dma.vmem_to_hbm [thread:$0]  %s389, 64, %s8, [#allocation5]
    $region53: #{tpu_custom_call.1} parent=1 // pred_fallthru
      _
    // Predicated region
    $region54: #{tpu_custom_call.1} parent=1 // pred_check
      _
    $region55: #{tpu_custom_call.1} parent=1 // pred_check_branch
      %393 = sbr.rel (0) target = $region57
    $region56: #{tpu_custom_call.1} parent=1 // pred_region
      %394 = dma.done [#allocation5], 64
    $region57: #{tpu_custom_call.1} parent=1 // pred_fallthru
      _
    %395 = vsyncpa [#allocation4], 1
    %396 = vsyncpa [#allocation7], 1
    %397 = vsyncpa [#allocation5], 1

</llo_original>
